<compile_context>
chip_gen: v7x
topology: tpu7x:2x2x1
jax: 0.10.0
libtpu: 0.0.40
codegen_flags: <defaults>
</compile_context>

<pallas_src>
import functools

import jax
import jax.numpy as jnp
from jax.experimental import pallas as pl
from jax.experimental.pallas import tpu as pltpu


IGNORE_LABEL = -1
THRESH = 0.7
MIN_KEPT = 100000  # matches the PyTorch default


def _ohem_ce_kernel(logits_ref, target_ref, out_ref, *, num_classes,
                    ignore_label):
    """Per-pixel CE loss (row 0) and true-class softmax prob (row 1).

    logits_ref: (C, TP) float32/bf16 — logits for TP pixels of one image
    target_ref: (1, TP) int32        — labels (ignore_label for ignored)
    out_ref:    (2, TP) float32      — [loss ; prob]
    """
    tgt = target_ref[...]                         # (1, TP)
    valid = tgt != ignore_label
    tmp = jnp.where(valid, tgt, 0)                # ignore -> class 0

    # Running max over the (small, static) class axis, one class row at a
    # time, so we never keep multiple (C, TP) temporaries live at large TP.
    m = logits_ref[0:1, :].astype(jnp.float32)
    for c in range(1, num_classes):
        m = jnp.maximum(m, logits_ref[c:c + 1, :].astype(jnp.float32))

    sumexp = jnp.zeros_like(m)
    logit_true = jnp.zeros_like(m)
    for c in range(num_classes):
        row = logits_ref[c:c + 1, :].astype(jnp.float32)   # (1, TP)
        sumexp = sumexp + jnp.exp(row - m)
        logit_true = logit_true + jnp.where(tmp == c, row, 0.0)

    lse = jnp.log(sumexp) + m                     # (1, TP)
    # CE with ignore_index -> 0 loss on ignored pixels (reduction='none')
    loss = jnp.where(valid, lse - logit_true, 0.0)
    # pred.gather(1, tmp_target): softmax prob of the (tmp-)true class
    prob = jnp.exp(logit_true - lse)

    out_ref[0:1, :] = loss
    out_ref[1:2, :] = prob


def _choose_tile_p(num_classes, hw, logits_itemsize):
    """Pick a lane tile so double-buffered blocks + temps stay well under the
    smallest scoped-VMEM budget (v7x: 64 MiB physical / 32 MiB scoped)."""
    per_lane = (2 * num_classes * logits_itemsize  # logits block x2 buffers
                + 2 * 4                            # target block  x2 buffers
                + 2 * 2 * 4                        # fused output  x2 buffers
                + 16 * 4)                          # in-kernel f32 temporaries
    budget = 20 * 1024 * 1024
    tile = budget // per_lane
    tile = min(tile, 32768)                        # lane-tile cap
    tile = max(128, (tile // 128) * 128)
    needed = -(-hw // 128) * 128                   # don't exceed what's there
    return int(min(tile, needed))


def _run_kernel(logits, target, *, tile_p, ignore_label):
    n, c, hw = logits.shape
    grid = (n, pl.cdiv(hw, tile_p))
    kernel = functools.partial(_ohem_ce_kernel, num_classes=c,
                               ignore_label=ignore_label)
    return pl.pallas_call(
        kernel,
        out_shape=jax.ShapeDtypeStruct((n, 2, hw), jnp.float32),
        grid=grid,
        in_specs=[
            pl.BlockSpec((None, c, tile_p), lambda b, i: (b, 0, i)),
            pl.BlockSpec((None, 1, tile_p), lambda b, i: (b, 0, i)),
        ],
        out_specs=pl.BlockSpec((None, 2, tile_p), lambda b, i: (b, 0, i)),
        compiler_params=pltpu.CompilerParams(
            dimension_semantics=("parallel", "parallel"),
            vmem_limit_bytes=48 * 1024 * 1024),
    )(logits, target)


def _kth_smallest_prob(prob_sel, k):
    """Exact k-th (0-indexed) smallest of prob_sel; all values in [0, 2].

    Non-negative float32 values order identically to their uint32 bit
    patterns, so a 32-step binary search over bit space recovers the exact
    order statistic with only cheap vectorized counting passes (no sort).
    """
    bits = jax.lax.bitcast_convert_type(prob_sel, jnp.uint32)

    def body(_, lohi):
        lo, hi = lohi
        mid = lo + (hi - lo) // 2
        cnt = jnp.sum((bits <= mid).astype(jnp.int32))
        take_hi = cnt >= k + 1
        return (jnp.where(take_hi, lo, mid + 1),
                jnp.where(take_hi, mid, hi))

    lo0 = jnp.uint32(0)
    hi0 = jax.lax.bitcast_convert_type(jnp.float32(2.0), jnp.uint32)
    lo, _ = jax.lax.fori_loop(0, 32, body, (lo0, hi0))
    return jax.lax.bitcast_convert_type(lo, jnp.float32)


@functools.partial(jax.jit,
                   static_argnames=("ignore_label", "thres", "min_kept"))
def ohem_cross_entropy(score, target, ignore_label=IGNORE_LABEL,
                       thres=THRESH, min_kept=MIN_KEPT):
    """score: (N, C, H, W) logits (f32 or bf16); target: (N, H, W) int labels.

    Returns a scalar loss matching OhemCrossEntropy._ohem_forward.
    """
    # TODO(synk): bilinear F.interpolate(align_corners=True) when score/target
    # spatial sizes differ is not implemented; matching sizes are required.
    N, C, H, W = score.shape
    assert target.shape == (N, H, W)
    min_kept = max(1, min_kept)
    HW = H * W
    P = N * HW

    # Free reshapes only — no transpose, no pad (each would cost an extra full
    # HBM pass over the logits).  bf16 logits pass straight through; the
    # kernel upcasts per class row.
    logits = score.reshape(N, C, HW)
    tgt = target.reshape(N, 1, HW).astype(jnp.int32)

    tile_p = _choose_tile_p(C, HW, jnp.dtype(score.dtype).itemsize)
    out = _run_kernel(logits, tgt, tile_p=tile_p, ignore_label=ignore_label)
    loss = out[:, 0, :].reshape(P)
    prob = out[:, 1, :].reshape(P)

    # ---------------- OHEM threshold selection (JAX glue, no sort) ----------
    tflat = target.reshape(P).astype(jnp.int32)
    mask = tflat != ignore_label
    num_valid = jnp.sum(mask.astype(jnp.int32))
    k = jnp.minimum(jnp.int32(min_kept), num_valid - 1)

    thres_f = jnp.float32(thres)
    # Invalid pixels get a sentinel above any softmax prob so they sort last.
    prob_sel = jnp.where(mask, prob, jnp.float32(2.0))

    # Fast path: if at least k+1 valid probs are <= thres, then the k-th
    # smallest is <= thres and the final threshold is exactly `thres`
    # (threshold = max(min_value, thres)).  Otherwise find the exact k-th
    # smallest valid prob via the bitwise binary search.
    c_le = jnp.sum((prob_sel <= thres_f).astype(jnp.int32))
    min_value = jax.lax.cond(
        c_le >= k + 1,
        lambda: thres_f,
        lambda: _kth_smallest_prob(prob_sel, k),
    )
    threshold = jnp.maximum(min_value, thres_f)

    selected = mask & (prob < threshold)
    sel_f = selected.astype(jnp.float32)
    # NOTE: like the PyTorch module, this is NaN when nothing is selected
    # (e.g. no valid pixels) — mean of an empty set.
    return jnp.sum(loss * sel_f) / jnp.sum(sel_f)


def _reference(score, target, ignore_label=IGNORE_LABEL,
               thres=THRESH, min_kept=MIN_KEPT):
    """Pure-JAX reference mirroring the PyTorch module (for verification)."""
    N, C, H, W = score.shape
    P = N * H * W
    logits = jnp.transpose(score, (1, 0, 2, 3)).reshape(C, P)
    tgt = target.reshape(P).astype(jnp.int32)
    mask = tgt != ignore_label
    tmp = jnp.where(mask, tgt, 0)
    logp = jax.nn.log_softmax(logits.astype(jnp.float32), axis=0)
    logp_true = jnp.take_along_axis(logp, tmp[None, :], axis=0)[0]
    loss = jnp.where(mask, -logp_true, 0.0)
    prob = jnp.exp(logp_true)
    num_valid = jnp.sum(mask.astype(jnp.int32))
    sorted_prob = jnp.sort(jnp.where(mask, prob, jnp.inf))
    k = jnp.minimum(jnp.int32(max(1, min_kept)), num_valid - 1)
    threshold = jnp.maximum(sorted_prob[jnp.maximum(k, 0)], jnp.float32(thres))
    selected = mask & (prob < threshold)
    sel_f = selected.astype(jnp.float32)
    return jnp.sum(loss * sel_f) / jnp.sum(sel_f)


if __name__ == "__main__":
    key = jax.random.PRNGKey(0)
    k_score, k_tgt, k_ign = jax.random.split(key, 3)

    N, C, H, W = 2, 4, 16, 16
    score = jax.random.normal(k_score, (N, C, H, W), dtype=jnp.float32) * 2.0
    target = jax.random.randint(k_tgt, (N, H, W), 0, C, dtype=jnp.int32)
    # sprinkle in some ignored pixels
    ign_mask = jax.random.uniform(k_ign, (N, H, W)) < 0.1
    target = jnp.where(ign_mask, jnp.int32(IGNORE_LABEL), target)

    out = ohem_cross_entropy(score, target)
    out = jax.block_until_ready(out)

    ref = jax.block_until_ready(_reference(score, target))
    assert jnp.allclose(out, ref, rtol=1e-5, atol=1e-5), (out, ref)

    print("KERNEL_OK")
</pallas_src>

<mosaic_0001>
module attributes {stable_mosaic.version = 11 : i64} {
  func.func @_ohem_ce_kernel(%arg0: i32, %arg1: i32, %arg2: memref<1x4x256xf32, #tpu.memory_space<vmem>>, %arg3: memref<1x1x256xi32, #tpu.memory_space<vmem>>, %arg4: memref<1x2x256xf32, #tpu.memory_space<vmem>>) attributes {dimension_semantics = [#tpu.dimension_semantics<parallel>, #tpu.dimension_semantics<parallel>], iteration_bounds = array<i64: 2, 1>, scalar_prefetch = 0 : i64, scratch_operands = 0 : i64, tpu.core_type = #tpu.core_type<tc>, window_params = [{transform_indices = @transform_0, window_bounds = array<i64: 1, 4, 256>}, {transform_indices = @transform_1, window_bounds = array<i64: 1, 1, 256>}, {transform_indices = @transform_2, window_bounds = array<i64: 1, 2, 256>}]} {
    %c0 = arith.constant 0 : index
    %c0_0 = arith.constant 0 : index
    %c0_1 = arith.constant 0 : index
    %0 = vector.load %arg3[%c0, %c0_0, %c0_1] : memref<1x1x256xi32, #tpu.memory_space<vmem>>, vector<1x1x256xi32>
    %1 = vector.shape_cast %0 : vector<1x1x256xi32> to vector<1x256xi32>
    %c-1_i32 = arith.constant -1 : i32
    %2 = vector.broadcast %c-1_i32 : i32 to vector<1x256xi32>
    %3 = arith.cmpi ne, %1, %2 : vector<1x256xi32>
    %c0_i32 = arith.constant 0 : i32
    %4 = vector.broadcast %c0_i32 : i32 to vector<1x256xi32>
    %5 = arith.select %3, %1, %4 : vector<1x256xi1>, vector<1x256xi32>
    %c0_2 = arith.constant 0 : index
    %c0_3 = arith.constant 0 : index
    %c0_4 = arith.constant 0 : index
    %6 = vector.load %arg2[%c0_2, %c0_3, %c0_4] : memref<1x4x256xf32, #tpu.memory_space<vmem>>, vector<1x1x256xf32>
    %7 = vector.shape_cast %6 : vector<1x1x256xf32> to vector<1x256xf32>
    %c0_5 = arith.constant 0 : index
    %c1 = arith.constant 1 : index
    %c0_6 = arith.constant 0 : index
    %8 = vector.load %arg2[%c0_5, %c1, %c0_6] : memref<1x4x256xf32, #tpu.memory_space<vmem>>, vector<1x1x256xf32>
    %9 = vector.shape_cast %8 : vector<1x1x256xf32> to vector<1x256xf32>
    %10 = arith.maximumf %7, %9 : vector<1x256xf32>
    %c0_7 = arith.constant 0 : index
    %c2 = arith.constant 2 : index
    %c0_8 = arith.constant 0 : index
    %11 = vector.load %arg2[%c0_7, %c2, %c0_8] : memref<1x4x256xf32, #tpu.memory_space<vmem>>, vector<1x1x256xf32>
    %12 = vector.shape_cast %11 : vector<1x1x256xf32> to vector<1x256xf32>
    %13 = arith.maximumf %10, %12 : vector<1x256xf32>
    %c0_9 = arith.constant 0 : index
    %c3 = arith.constant 3 : index
    %c0_10 = arith.constant 0 : index
    %14 = vector.load %arg2[%c0_9, %c3, %c0_10] : memref<1x4x256xf32, #tpu.memory_space<vmem>>, vector<1x1x256xf32>
    %15 = vector.shape_cast %14 : vector<1x1x256xf32> to vector<1x256xf32>
    %16 = arith.maximumf %13, %15 : vector<1x256xf32>
    %cst = arith.constant 0.000000e+00 : f32
    %17 = vector.broadcast %cst : f32 to vector<1x256xf32>
    %cst_11 = arith.constant 0.000000e+00 : f32
    %18 = vector.broadcast %cst_11 : f32 to vector<1x256xf32>
    %c0_12 = arith.constant 0 : index
    %c0_13 = arith.constant 0 : index
    %c0_14 = arith.constant 0 : index
    %19 = vector.load %arg2[%c0_12, %c0_13, %c0_14] : memref<1x4x256xf32, #tpu.memory_space<vmem>>, vector<1x1x256xf32>
    %20 = vector.shape_cast %19 : vector<1x1x256xf32> to vector<1x256xf32>
    %21 = arith.subf %20, %16 : vector<1x256xf32>
    %22 = math.exp %21 : vector<1x256xf32>
    %23 = arith.addf %17, %22 : vector<1x256xf32>
    %c0_i32_15 = arith.constant 0 : i32
    %24 = vector.broadcast %c0_i32_15 : i32 to vector<1x256xi32>
    %25 = arith.cmpi eq, %5, %24 : vector<1x256xi32>
    %cst_16 = arith.constant 0.000000e+00 : f32
    %26 = vector.broadcast %cst_16 : f32 to vector<1x256xf32>
    %27 = arith.select %25, %20, %26 : vector<1x256xi1>, vector<1x256xf32>
    %28 = arith.addf %18, %27 : vector<1x256xf32>
    %c0_17 = arith.constant 0 : index
    %c1_18 = arith.constant 1 : index
    %c0_19 = arith.constant 0 : index
    %29 = vector.load %arg2[%c0_17, %c1_18, %c0_19] : memref<1x4x256xf32, #tpu.memory_space<vmem>>, vector<1x1x256xf32>
    %30 = vector.shape_cast %29 : vector<1x1x256xf32> to vector<1x256xf32>
    %31 = arith.subf %30, %16 : vector<1x256xf32>
    %32 = math.exp %31 : vector<1x256xf32>
    %33 = arith.addf %23, %32 : vector<1x256xf32>
    %c1_i32 = arith.constant 1 : i32
    %34 = vector.broadcast %c1_i32 : i32 to vector<1x256xi32>
    %35 = arith.cmpi eq, %5, %34 : vector<1x256xi32>
    %cst_20 = arith.constant 0.000000e+00 : f32
    %36 = vector.broadcast %cst_20 : f32 to vector<1x256xf32>
    %37 = arith.select %35, %30, %36 : vector<1x256xi1>, vector<1x256xf32>
    %38 = arith.addf %28, %37 : vector<1x256xf32>
    %c0_21 = arith.constant 0 : index
    %c2_22 = arith.constant 2 : index
    %c0_23 = arith.constant 0 : index
    %39 = vector.load %arg2[%c0_21, %c2_22, %c0_23] : memref<1x4x256xf32, #tpu.memory_space<vmem>>, vector<1x1x256xf32>
    %40 = vector.shape_cast %39 : vector<1x1x256xf32> to vector<1x256xf32>
    %41 = arith.subf %40, %16 : vector<1x256xf32>
    %42 = math.exp %41 : vector<1x256xf32>
    %43 = arith.addf %33, %42 : vector<1x256xf32>
    %c2_i32 = arith.constant 2 : i32
    %44 = vector.broadcast %c2_i32 : i32 to vector<1x256xi32>
    %45 = arith.cmpi eq, %5, %44 : vector<1x256xi32>
    %cst_24 = arith.constant 0.000000e+00 : f32
    %46 = vector.broadcast %cst_24 : f32 to vector<1x256xf32>
    %47 = arith.select %45, %40, %46 : vector<1x256xi1>, vector<1x256xf32>
    %48 = arith.addf %38, %47 : vector<1x256xf32>
    %c0_25 = arith.constant 0 : index
    %c3_26 = arith.constant 3 : index
    %c0_27 = arith.constant 0 : index
    %49 = vector.load %arg2[%c0_25, %c3_26, %c0_27] : memref<1x4x256xf32, #tpu.memory_space<vmem>>, vector<1x1x256xf32>
    %50 = vector.shape_cast %49 : vector<1x1x256xf32> to vector<1x256xf32>
    %51 = arith.subf %50, %16 : vector<1x256xf32>
    %52 = math.exp %51 : vector<1x256xf32>
    %53 = arith.addf %43, %52 : vector<1x256xf32>
    %c3_i32 = arith.constant 3 : i32
    %54 = vector.broadcast %c3_i32 : i32 to vector<1x256xi32>
    %55 = arith.cmpi eq, %5, %54 : vector<1x256xi32>
    %cst_28 = arith.constant 0.000000e+00 : f32
    %56 = vector.broadcast %cst_28 : f32 to vector<1x256xf32>
    %57 = arith.select %55, %50, %56 : vector<1x256xi1>, vector<1x256xf32>
    %58 = arith.addf %48, %57 : vector<1x256xf32>
    %59 = math.log %53 : vector<1x256xf32>
    %60 = arith.addf %59, %16 : vector<1x256xf32>
    %61 = arith.subf %60, %58 : vector<1x256xf32>
    %cst_29 = arith.constant 0.000000e+00 : f32
    %62 = vector.broadcast %cst_29 : f32 to vector<1x256xf32>
    %63 = arith.select %3, %61, %62 : vector<1x256xi1>, vector<1x256xf32>
    %64 = arith.subf %58, %60 : vector<1x256xf32>
    %65 = math.exp %64 : vector<1x256xf32>
    %c0_30 = arith.constant 0 : index
    %c0_31 = arith.constant 0 : index
    %c0_32 = arith.constant 0 : index
    %66 = vector.load %arg4[%c0_30, %c0_31, %c0_32] : memref<1x2x256xf32, #tpu.memory_space<vmem>>, vector<1x1x256xf32>
    %67 = vector.shape_cast %66 : vector<1x1x256xf32> to vector<1x256xf32>
    %68 = vector.shape_cast %63 : vector<1x256xf32> to vector<1x1x256xf32>
    tpu.vector_store %arg4[%c0_30, %c0_31, %c0_32], %68 {strides = array<i32>} : memref<1x2x256xf32, #tpu.memory_space<vmem>>, vector<1x1x256xf32>,
    %c0_33 = arith.constant 0 : index
    %c1_34 = arith.constant 1 : index
    %c0_35 = arith.constant 0 : index
    %69 = vector.load %arg4[%c0_33, %c1_34, %c0_35] : memref<1x2x256xf32, #tpu.memory_space<vmem>>, vector<1x1x256xf32>
    %70 = vector.shape_cast %69 : vector<1x1x256xf32> to vector<1x256xf32>
    %71 = vector.shape_cast %65 : vector<1x256xf32> to vector<1x1x256xf32>
    tpu.vector_store %arg4[%c0_33, %c1_34, %c0_35], %71 {strides = array<i32>} : memref<1x2x256xf32, #tpu.memory_space<vmem>>, vector<1x1x256xf32>,
    return
  }
  func.func @transform_0(%arg0: i32, %arg1: i32) -> (i32, i32, i32) {
    %c0_i32 = arith.constant 0 : i32
    %c0_i32_0 = arith.constant 0 : i32
    return %arg0, %c0_i32, %arg1 : i32, i32, i32
  }
  func.func @transform_1(%arg0: i32, %arg1: i32) -> (i32, i32, i32) {
    %c0_i32 = arith.constant 0 : i32
    %c0_i32_0 = arith.constant 0 : i32
    return %arg0, %c0_i32, %arg1 : i32, i32, i32
  }
  func.func @transform_2(%arg0: i32, %arg1: i32) -> (i32, i32, i32) {
    %c0_i32 = arith.constant 0 : i32
    %c0_i32_0 = arith.constant 0 : i32
    return %arg0, %c0_i32, %arg1 : i32, i32, i32
  }
}

</mosaic_0001>

<llo_original>
// kernel: ohem_cross_entropy.1
$region0: #{ohem_cross_entropy.1}
  #allocation0 [shape = 'u32[]', space=smem, size = 0x4, offset = 0x4, fixed_abs, tag = 'smem constant byte address 0x4 - core index']
  #allocation1 [shape = 'u32[144,128]{1,0:T(1,128)}', space=vmem, size = 0x12000, scoped, tag = 'internal scratch']
  %s0 = inlined_call_operand.vmem [shape: f32[2,4,256], index: 0, kind: input, shape index: {}]
  %s1 = inlined_call_operand.vmem [shape: s32[2,1,256], index: 1, kind: input, shape index: {}]
  %s2 = inlined_call_operand.vmem [shape: f32[2,2,256], index: 2, kind: output, shape index: {}]
  %s3 = sld [smem:[#allocation0]]
  $region41: #{ohem_cross_entropy.1} parent=0
    _
  %s5 = ssub.s32 1, %s3
  %s6 = scalar_select 0, %s5, %s3
  loop: start=0, step=1, limit=4
  $region2: #{ohem_cross_entropy.1} parent=0 // loop_pre_header
    _
  $region3: #{ohem_cross_entropy.1} parent=0 // loop_header
    %s8 = sphi 0, %s12
    %p9 = scmp.ge.s32.totalorder %s8, 4
    %s15 = sphi 0, %s27
    %s16 = sphi 0, %s23
    %s17 = sphi 0, %s15
    %s18 = sphi 0, %s16
    %s19 = sphi 0, %s17
    %s20 = sphi 0, %s18
    %s32 = sphi 0, %s34
    %s35 = sphi 0, %s32
    %s36 = sphi 0, %s35
    %s52 = sphi 0, %s36
    %s60 = sphi 0, %s62
    %s63 = sphi 0, %s60
    %s64 = sphi 0, %s63
    %s80 = sphi 0, %s64
    %s88 = sphi 0, %s90
    %s91 = sphi 0, %s88
    %s92 = sphi 0, %s91
    %s108 = sphi 0, %s92
  $region4: #{ohem_cross_entropy.1} parent=0 // loop_header_branch
    %11 = sbr.rel (%p9) target = $region8
  $region5: #{ohem_cross_entropy.1} parent=0 // loop_body
    %s13 = ssub.s32 %s8, 1
    %s14 = ssub.s32 %s8, 2
    %s21 = sadd.s32 1, %s16
    %p22 = scmp.ge.s32.totalorder %s21, 1
    %s23 = scalar_select %p22, 0, %s21
    %s24 = sadd.s32 1, %s15
    %s25 = scalar_select %p22, %s24, %s15
    %p26 = scmp.ge.s32.totalorder %s25, 2
    %s27 = scalar_select %p26, 0, %s25
    %s28 = ssub.s32 %s15, %s27
    %s29 = ssub.s32 %s16, %s23
    %s30 = sor.u32 %s28, %s29
    %p31 = scmp.eq.s32.totalorder %s30, 0
    %s33 = sadd.s32 %s32, 1
    %s34 = scalar_select %p31, %s32, %s33
    %p37 = pneg %p31
    %p38 = scmp.eq.s32.totalorder %s8, 1
    %p39 = por %p37, %p38
    %p40 = scmp.ne.s32.totalorder %s32, %s35
    %p41 = scmp.eq.s32.totalorder %s8, 0
    %p42 = por %p40, %p41
    %p43 = scmp.ne.s32.totalorder %s32, %s35
    %p44 = scmp.eq.s32.totalorder %s13, 1
    %p45 = por %p43, %p44
    %p46 = scmp.ne.s32.totalorder %s35, %s36
    %p47 = scmp.eq.s32.totalorder %s13, 0
    %p48 = por %p46, %p47
    %p49 = scmp.ne.s32.totalorder %s35, %s36
    %p50 = scmp.eq.s32.totalorder %s14, 1
    %p51 = por %p49, %p50
    %p53 = scmp.ne.s32.totalorder %s36, %s52
    %p54 = scmp.eq.s32.totalorder %s14, 0
    %p55 = por %p53, %p54
    %s56 = ssub.s32 %s15, %s27
    %s57 = ssub.s32 %s16, %s23
    %s58 = sor.u32 %s56, %s57
    %p59 = scmp.eq.s32.totalorder %s58, 0
    %s61 = sadd.s32 %s60, 1
    %s62 = scalar_select %p59, %s60, %s61
    %p65 = pneg %p59
    %p66 = scmp.eq.s32.totalorder %s8, 1
    %p67 = por %p65, %p66
    %p68 = scmp.ne.s32.totalorder %s60, %s63
    %p69 = scmp.eq.s32.totalorder %s8, 0
    %p70 = por %p68, %p69
    %p71 = scmp.ne.s32.totalorder %s60, %s63
    %p72 = scmp.eq.s32.totalorder %s13, 1
    %p73 = por %p71, %p72
    %p74 = scmp.ne.s32.totalorder %s63, %s64
    %p75 = scmp.eq.s32.totalorder %s13, 0
    %p76 = por %p74, %p75
    %p77 = scmp.ne.s32.totalorder %s63, %s64
    %p78 = scmp.eq.s32.totalorder %s14, 1
    %p79 = por %p77, %p78
    %p81 = scmp.ne.s32.totalorder %s64, %s80
    %p82 = scmp.eq.s32.totalorder %s14, 0
    %p83 = por %p81, %p82
    %s84 = ssub.s32 %s15, %s27
    %s85 = ssub.s32 %s16, %s23
    %s86 = sor.u32 %s84, %s85
    %p87 = scmp.eq.s32.totalorder %s86, 0
    %s89 = sadd.s32 %s88, 1
    %s90 = scalar_select %p87, %s88, %s89
    %p93 = pneg %p87
    %p94 = scmp.eq.s32.totalorder %s8, 1
    %p95 = por %p93, %p94
    %p96 = scmp.ne.s32.totalorder %s88, %s91
    %p97 = scmp.eq.s32.totalorder %s8, 0
    %p98 = por %p96, %p97
    %p99 = scmp.ne.s32.totalorder %s88, %s91
    %p100 = scmp.eq.s32.totalorder %s13, 1
    %p101 = por %p99, %p100
    %p102 = scmp.ne.s32.totalorder %s91, %s92
    %p103 = scmp.eq.s32.totalorder %s13, 0
    %p104 = por %p102, %p103
    %p105 = scmp.ne.s32.totalorder %s91, %s92
    %p106 = scmp.eq.s32.totalorder %s14, 1
    %p107 = por %p105, %p106
    %p109 = scmp.ne.s32.totalorder %s92, %s108
    %p110 = scmp.eq.s32.totalorder %s14, 0
    %p111 = por %p109, %p110
    %p112 = scmp.le.s32.totalorder 1, %s8
    %p113 = scmp.lt.s32.totalorder %s8, 3
    %p114 = pnand %p112, %p113
    %p115 = pneg %p114
    // Predicated region
    $region9: #{ohem_cross_entropy.1} parent=5 // pred_check
      _
    $region10: #{ohem_cross_entropy.1} parent=5 // pred_check_branch
      %117 = sbr.rel (%p114) target = $region12
    $region11: #{ohem_cross_entropy.1} parent=5 // pred_region
      %s118 = ssub.s32 %s8, 1
    $region12: #{ohem_cross_entropy.1} parent=5 // pred_fallthru
      _
    %p119 = scmp.lt.s32.totalorder %s8, 2
    // Predicated region
    $region13: #{ohem_cross_entropy.1} parent=5 // pred_check
      %p120 = pneg %p119
    $region14: #{ohem_cross_entropy.1} parent=5 // pred_check_branch
      %122 = sbr.rel (%p120) target = $region16
    $region15: #{ohem_cross_entropy.1} parent=5 // pred_region
      // Predicated region
      $region17: #{ohem_cross_entropy.1} parent=15 // pred_check
        %p123 = pneg %p42
      $region18: #{ohem_cross_entropy.1} parent=15 // pred_check_branch
        %125 = sbr.rel (%p123) target = $region20
      $region19: #{ohem_cross_entropy.1} parent=15 // pred_region
        %s126 = smul.u32 2, %s16
        %p127 = scmp.lt.s32.totalorder %s15, 1
        %s128 = scalar_select %p127, %s15, 1
        %p129 = scmp.lt.s32.totalorder %s126, 1
        %s130 = scalar_select %p129, %s126, 1
        %s131 = smul.addr %s128, 2
        %s132 = sadd.s32 %s130, %s131
        %s133 = smul.addr %s132, 4
        %s134 = scalar_lea.vmem %s0, %s133
        %s135 = smul.u32 2, %s16
      $region20: #{ohem_cross_entropy.1} parent=15 // pred_fallthru
        _
      // Predicated region
      $region21: #{ohem_cross_entropy.1} parent=15 // pred_check
        %p136 = pneg %p70
      $region22: #{ohem_cross_entropy.1} parent=15 // pred_check_branch
        %138 = sbr.rel (%p136) target = $region24
      $region23: #{ohem_cross_entropy.1} parent=15 // pred_region
        %s139 = smul.u32 2, %s16
        %p140 = scmp.lt.s32.totalorder %s15, 1
        %s141 = scalar_select %p140, %s15, 1
        %p142 = scmp.lt.s32.totalorder %s139, 1
        %s143 = scalar_select %p142, %s139, 1
        %s144 = smul.addr %s141, 2
        %s145 = sadd.s32 %s143, %s144
        %s146 = scalar_lea.vmem %s1, %s145
        %s147 = smul.u32 2, %s16
      $region24: #{ohem_cross_entropy.1} parent=15 // pred_fallthru
        _
    $region16: #{ohem_cross_entropy.1} parent=5 // pred_fallthru
      _
    %p148 = scmp.le.s32.totalorder 1, %s8
    %p149 = scmp.lt.s32.totalorder %s8, 3
    %p150 = pnand %p148, %p149
    %p151 = pneg %p150
    // Predicated region
    $region25: #{ohem_cross_entropy.1} parent=5 // pred_check
      _
    $region26: #{ohem_cross_entropy.1} parent=5 // pred_check_branch
      %153 = sbr.rel (%p150) target = $region28
    $region27: #{ohem_cross_entropy.1} parent=5 // pred_region
      %s154 = ssub.s32 %s8, 1
      %s155 = smul.u32 2, %s18
      %p156 = scmp.lt.s32.totalorder %s17, 1
      %s157 = scalar_select %p156, %s17, 1
      %p158 = scmp.lt.s32.totalorder %s155, 1
      %s159 = scalar_select %p158, %s155, 1
      %s160 = smul.addr %s157, 2
      %s161 = sadd.s32 %s159, %s160
      %s162 = smul.addr %s161, 4
      %s163 = scalar_lea.vmem %s0, %s162
      %p164 = pneg %p48
      %p165 = pneg %p45
      %s166 = smul.u32 2, %s18
      %p167 = scmp.lt.s32.totalorder %s17, 1
      %s168 = scalar_select %p167, %s17, 1
      %p169 = scmp.lt.s32.totalorder %s166, 1
      %s170 = scalar_select %p169, %s166, 1
      %s171 = smul.addr %s168, 2
      %s172 = sadd.s32 %s170, %s171
      %s173 = scalar_lea.vmem %s1, %s172
      %p174 = pneg %p76
      %p175 = pneg %p73
      %p176 = pneg %p104
      %p177 = pneg %p101
      %s178 = smul.u32 2, %s18
      %p179 = scmp.lt.s32.totalorder %s17, 1
      %s180 = scalar_select %p179, %s17, 1
      %p181 = scmp.lt.s32.totalorder %s178, 1
      %s182 = scalar_select %p181, %s178, 1
      %s183 = smul.addr %s180, 2
      %s184 = sadd.s32 %s182, %s183
      %s185 = smul.addr %s184, 2
      %s186 = scalar_lea.vmem %s2, %s185
      %s187 = smul.u32 2, %s18
      %p188 = scmp.lt.s32.totalorder %s17, 1
      %s189 = scalar_select %p188, %s17, 1
      %p190 = scmp.lt.s32.totalorder %s187, 1
      %s191 = scalar_select %p190, %s187, 1
      %s192 = smul.addr %s189, 2
      %s193 = sadd.s32 %s191, %s192
      %s194 = smul.addr %s193, 4
      %s195 = scalar_lea.vmem %s0, %s194
      %s196 = smul.u32 2, %s18
      %s197 = smul.u32 2, %s18
      %p198 = scmp.lt.s32.totalorder %s17, 1
      %s199 = scalar_select %p198, %s17, 1
      %p200 = scmp.lt.s32.totalorder %s197, 1
      %s201 = scalar_select %p200, %s197, 1
      %s202 = smul.addr %s199, 2
      %s203 = sadd.s32 %s201, %s202
      %s204 = scalar_lea.vmem %s1, %s203
      %s205 = smul.u32 2, %s18
      %s206 = smul.u32 2, %s18
      %p207 = scmp.lt.s32.totalorder %s17, 1
      %s208 = scalar_select %p207, %s17, 1
      %p209 = scmp.lt.s32.totalorder %s206, 1
      %s210 = scalar_select %p209, %s206, 1
      %s211 = smul.addr %s208, 2
      %s212 = sadd.s32 %s210, %s211
      %s213 = smul.addr %s212, 2
      %s214 = scalar_lea.vmem %s2, %s213
      %s215 = smul.u32 2, %s18
      %v216 = vld [vmem:[%s204] sm:$0x3]
      %vm217 = vcmp.ne.s32.totalorder %v216, 4294967295
      %v218 = vsel %vm217, %v216, 0
      %v219 = vld [vmem:[%s195] ss:$4 sm:$0x3]
      %s220 = scalar_lea.vmem %s195, 1
      %v221 = vld [vmem:[%s220] ss:$4 sm:$0x3]
      %v222 = vmax.f32 %v219, %v221
      %s223 = scalar_lea.vmem %s195, 2
      %v224 = vld [vmem:[%s223] ss:$4 sm:$0x3]
      %v225 = vmax.f32 %v222, %v224
      %s226 = scalar_lea.vmem %s195, 3
      %v227 = vld [vmem:[%s226] ss:$4 sm:$0x3]
      %v228 = vmax.f32 %v225, %v227
      %v229 = vsub.f32 %v219, %v228
      %v230 = vmul.f32 %v229, 1.442695
      %v231 = vpow.pop %v230
      %v232 = vadd.f32 %v231, 0.0
      %vm233 = vcmp.eq.s32.totalorder %v218, 0
      %v234 = vsel %vm233, %v219, 0.0
      %v235 = vadd.f32 %v234, 0.0
      %v236 = vsub.f32 %v221, %v228
      %v237 = vmul.f32 %v236, 1.442695
      %v238 = vpow.pop %v237
      %v239 = vadd.f32 %v232, %v238
      %vm240 = vcmp.eq.s32.totalorder %v218, 1
      %v241 = vsel %vm240, %v221, 0.0
      %v242 = vadd.f32 %v235, %v241
      %v243 = vsub.f32 %v224, %v228
      %v244 = vmul.f32 %v243, 1.442695
      %v245 = vpow.pop %v244
      %v246 = vadd.f32 %v239, %v245
      %vm247 = vcmp.eq.s32.totalorder %v218, 2
      %v248 = vsel %vm247, %v224, 0.0
      %v249 = vadd.f32 %v242, %v248
      %v250 = vsub.f32 %v227, %v228
      %v251 = vmul.f32 %v250, 1.442695
      %v252 = vpow.pop %v251
      %v253 = vadd.f32 %v246, %v252
      %vm254 = vcmp.eq.s32.totalorder %v218, 3
      %v255 = vsel %vm254, %v227, 0.0
      %v256 = vadd.f32 %v249, %v255
      %v257 = vlog2.pop %v253
      %v258 = vmul.f32 %v257, 0.6931472
      %v259 = vadd.f32 %v258, %v228
      %v260 = vsub.f32 %v259, %v256
      %v261 = vsel %vm217, %v260, 0.0
      %v262 = vsub.f32 %v256, %v259
      %v263 = vmul.f32 %v262, 1.442695
      %v264 = vpow.pop %v263
      %v265 = vlaneseq
      %vm266 = vcmp.ge.s32.totalorder %v265, 0
      %vm267 = vcmp.lt.s32.totalorder %v265, 256
      %vm268 = vmand %vm266, %vm267
      %269 = vst.msk [vmem:[%s214] ss:$2 sm:$0x3] %vm268, %v261
      %s270 = scalar_lea.vmem %s214, 1
      %271 = vst.msk [vmem:[%s270] ss:$2 sm:$0x3] %vm268, %v264
      %s272 = smul.u32 2, %s18
      %p273 = scmp.lt.s32.totalorder %s17, 1
      %s274 = scalar_select %p273, %s17, 1
      %p275 = scmp.lt.s32.totalorder %s272, 1
      %s276 = scalar_select %p275, %s272, 1
      %s277 = smul.addr %s274, 2
      %s278 = sadd.s32 %s276, %s277
      %s279 = smul.addr %s278, 2
      %s280 = scalar_lea.vmem %s2, %s279
      // Predicated region
      $region29: #{ohem_cross_entropy.1} parent=27 // pred_check
        %p281 = pneg %p101
      $region30: #{ohem_cross_entropy.1} parent=27 // pred_check_branch
        %283 = sbr.rel (%p281) target = $region32
      $region31: #{ohem_cross_entropy.1} parent=27 // pred_region
        %s284 = smul.u32 2, %s18
      $region32: #{ohem_cross_entropy.1} parent=27 // pred_fallthru
        _
    $region28: #{ohem_cross_entropy.1} parent=5 // pred_fallthru
      _
    %p285 = scmp.le.s32.totalorder 2, %s8
    // Predicated region
    $region33: #{ohem_cross_entropy.1} parent=5 // pred_check
      %p286 = pneg %p285
    $region34: #{ohem_cross_entropy.1} parent=5 // pred_check_branch
      %288 = sbr.rel (%p286) target = $region36
    $region35: #{ohem_cross_entropy.1} parent=5 // pred_region
      %s289 = ssub.s32 %s8, 2
      // Predicated region
      $region37: #{ohem_cross_entropy.1} parent=35 // pred_check
        %p290 = pneg %p107
      $region38: #{ohem_cross_entropy.1} parent=35 // pred_check_branch
        %292 = sbr.rel (%p290) target = $region40
      $region39: #{ohem_cross_entropy.1} parent=35 // pred_region
        %s293 = smul.u32 2, %s20
        %p294 = scmp.lt.s32.totalorder %s19, 1
        %s295 = scalar_select %p294, %s19, 1
        %p296 = scmp.lt.s32.totalorder %s293, 1
        %s297 = scalar_select %p296, %s293, 1
        %s298 = smul.addr %s295, 2
        %s299 = sadd.s32 %s297, %s298
        %s300 = smul.addr %s299, 2
        %s301 = scalar_lea.vmem %s2, %s300
      $region40: #{ohem_cross_entropy.1} parent=35 // pred_fallthru
        _
    $region36: #{ohem_cross_entropy.1} parent=5 // pred_fallthru
      _
  $region6: #{ohem_cross_entropy.1} parent=0 // loop_footer
    %s12 = sadd.s32 1, %s8
  $region7: #{ohem_cross_entropy.1} parent=0 // loop_footer_branch
    %7 = sbr.rel target = $region3
  $region8: #{ohem_cross_entropy.1} parent=0 // loop_exit
    _

</llo_original>
